<compile_context>
chip_gen: v7x
topology: tpu7x:2x2x1
jax: 0.10.0
libtpu: 0.0.40
codegen_flags: <defaults>
</compile_context>

<pallas_src>
import jax
import jax.numpy as jnp
from jax.experimental import pallas as pl
from jax.experimental.pallas import tpu as pltpu


def _round_up(x, m):
    return (x + m - 1) // m * m


def _round_down_mult(x, m):
    return max(m, (x // m) * m)


def ffn_kernel_acc(x_ref, w1_ref, b1_ref, w2_ref, b2_ref, o_ref, acc_ref):
    """Streamed-dff variant: dff reduction over grid axis 1, f32 VMEM accumulator."""
    k = pl.program_id(1)

    @pl.when(k == 0)
    def _():
        acc_ref[...] = jnp.zeros_like(acc_ref)

    # First linear on this dff slice: [TM, D] @ [D, TF] + b1[slice], then ReLU.
    h = jnp.dot(x_ref[...], w1_ref[...], preferred_element_type=jnp.float32)
    h = jnp.maximum(h + b1_ref[...], 0.0)

    # Accumulate partial product of the second linear: [TM, TF] @ [TF, D].
    acc_ref[...] += jnp.dot(h.astype(w2_ref.dtype), w2_ref[...],
                            preferred_element_type=jnp.float32)

    # Epilogue: fold in b2 and write the output tile once per M tile.
    @pl.when(k == pl.num_programs(1) - 1)
    def _():
        o_ref[...] = (acc_ref[...] + b2_ref[...]).astype(o_ref.dtype)


def ffn_kernel_fused(x_ref, w1_ref, b1_ref, w2_ref, b2_ref, o_ref):
    """Collapsed-dff variant (single reduction step): whole FFN in one shot, no scratch."""
    h = jnp.dot(x_ref[...], w1_ref[...], preferred_element_type=jnp.float32)
    h = jnp.maximum(h + b1_ref[...], 0.0)
    out = jnp.dot(h.astype(w2_ref.dtype), w2_ref[...],
                  preferred_element_type=jnp.float32)
    o_ref[...] = (out + b2_ref[...]).astype(o_ref.dtype)


def ffn_forward(x, w1, b1, w2, b2, *, tm=1024, tf=1024):
    """x: [batch, seq, d_model]; w1: [d_model, dff] ([in, out]); w2: [dff, d_model]."""
    batch, seq, d_model = x.shape
    dff = w1.shape[1]
    M = batch * seq

    itemsize = jnp.dtype(x.dtype).itemsize
    # Sublane packing of the activation dtype (8 for f32, 16 for bf16, 32 for int8/fp8).
    pack = {4: 8, 2: 16, 1: 32}.get(itemsize, 8)

    dmp = _round_up(d_model, 128)       # padded d_model (lane-dense output N)
    dff128 = _round_up(dff, 128)        # minimal padded dff

    # ---- Generation-aware VMEM budget -------------------------------------
    try:
        vmem_cap = int(getattr(pltpu.get_tpu_info(), "vmem_capacity_bytes", 64 << 20))
    except Exception:
        vmem_cap = 64 << 20             # conservative: valid on every generation
    # ~108 MiB on 128 MiB chips (v5e/v6e), ~48 MiB on 64 MiB/TC chips (v7x).
    budget = max(min(vmem_cap - (16 << 20), int(vmem_cap * 0.85)), 24 << 20)

    # ---- M tile (carries arithmetic intensity) ----------------------------
    TM = min(_round_up(tm, pack), _round_up(M, pack))
    # Keep >=2 M tiles so the parallel axis can be sharded across both
    # TensorCores (v7x) / megacore instead of leaving a core idle.
    if TM > pack and _round_up(M, TM) // TM < 2:
        TM = _round_up((TM + 1) // 2, pack)

    # ---- dff slice ----------------------------------------------------------
    # Collapse the reduction entirely when the full (padded) weights fit
    # comfortably in VMEM: weights are DMA'd once for the whole kernel.
    if 2 * 2 * dmp * dff128 * itemsize <= budget // 2:
        TF = dff128
    else:
        TF = min(_round_up(tf, 128), dff128)

    # ---- VMEM fit: shrink TF before TM -------------------------------------
    # TODO(synk): for very large d_model (>=8K f32) the dmp*TF weight slices
    # dominate; add a d_model contraction tile for the first matmul instead of
    # shrinking TM.
    def footprint(tm_, tf_):
        tiles = (tm_ * dmp          # x tile (resident over k)
                 + dmp * tf_        # w1 slice
                 + 8 * tf_          # b1 slice (sublane-padded)
                 + tf_ * dmp        # w2 slice
                 + 8 * dmp          # b2
                 + tm_ * dmp)       # out tile
        # double-buffered pipeline tiles + f32 accumulator + f32 h intermediate
        return 2 * tiles * itemsize + tm_ * dmp * 4 + tm_ * tf_ * 4

    while footprint(TM, TF) > budget:
        if TF > 128:
            TF = _round_down_mult(TF // 2, 128)
        elif TM > pack:
            TM = _round_down_mult(TM // 2, pack)
        else:
            break

    # Pad dff UP to a multiple of TF (zero padding is exact for this FFN).
    dffp = _round_up(dff, TF)
    Mp = _round_up(M, TM)
    mt, kt = Mp // TM, dffp // TF
    grid = (mt, kt)

    # ---- Zero-pad operands (exact; padded rows/cols sliced off below) ------
    x2d = x.reshape(M, d_model)
    if (Mp, dmp) != (M, d_model):
        x2d = jnp.pad(x2d, ((0, Mp - M), (0, dmp - d_model)))
    w1p = w1 if (dmp, dffp) == (d_model, dff) else jnp.pad(
        w1, ((0, dmp - d_model), (0, dffp - dff)))
    w2p = w2 if (dffp, dmp) == (dff, d_model) else jnp.pad(
        w2, ((0, dffp - dff), (0, dmp - d_model)))
    b1p = jnp.pad(b1, (0, dffp - dff)).reshape(1, dffp)
    b2p = jnp.pad(b2, (0, dmp - d_model)).reshape(1, dmp)

    # ---- Cost estimate (padded extents; weights re-streamed per M tile) ----
    weight_fetches = 1 if kt == 1 else mt
    flops = 4 * Mp * dmp * dffp
    bytes_accessed = itemsize * (2 * Mp * dmp
                                 + weight_fetches * 2 * dmp * dffp
                                 + weight_fetches * (dffp + dmp))
    cost = pl.CostEstimate(flops=int(flops), transcendentals=0,
                           bytes_accessed=int(bytes_accessed))

    if kt == 1:
        kernel = ffn_kernel_fused
        scratch = []
    else:
        kernel = ffn_kernel_acc
        scratch = [pltpu.VMEM((TM, dmp), jnp.float32)]

    vmem_limit = int(min(vmem_cap - (1 << 20), budget + (8 << 20)))

    out2d = pl.pallas_call(
        kernel,
        out_shape=jax.ShapeDtypeStruct((Mp, dmp), x.dtype),
        grid_spec=pltpu.PrefetchScalarGridSpec(
            num_scalar_prefetch=0,
            grid=grid,
            in_specs=[
                pl.BlockSpec((TM, dmp), lambda i, k: (i, 0)),   # x tile (resident over k)
                pl.BlockSpec((dmp, TF), lambda i, k: (0, k)),   # w1 dff-slice
                pl.BlockSpec((1, TF),   lambda i, k: (0, k)),   # b1 dff-slice
                pl.BlockSpec((TF, dmp), lambda i, k: (k, 0)),   # w2 dff-slice
                pl.BlockSpec((1, dmp),  lambda i, k: (0, 0)),   # b2 (resident)
            ],
            out_specs=pl.BlockSpec((TM, dmp), lambda i, k: (i, 0)),
            scratch_shapes=scratch,
        ),
        compiler_params=pltpu.CompilerParams(
            dimension_semantics=("parallel", "arbitrary"),
            vmem_limit_bytes=vmem_limit,
        ),
        cost_estimate=cost,
    )(x2d, w1p, b1p, w2p, b2p)

    return out2d[:M, :d_model].reshape(batch, seq, d_model)


def init_ffn_params(key, d_model, dff, dtype=jnp.float32):
    """Deterministic init mirroring torch.nn.Linear defaults
    (uniform(-1/sqrt(fan_in), 1/sqrt(fan_in)) for weight and bias).
    Weights are stored transposed as [in, out] for the kernel."""
    k1, k2, k3, k4 = jax.random.split(key, 4)
    bound1 = 1.0 / jnp.sqrt(d_model)
    bound2 = 1.0 / jnp.sqrt(dff)
    w1 = jax.random.uniform(k1, (d_model, dff), dtype, -bound1, bound1)
    b1 = jax.random.uniform(k2, (dff,), dtype, -bound1, bound1)
    w2 = jax.random.uniform(k3, (dff, d_model), dtype, -bound2, bound2)
    b2 = jax.random.uniform(k4, (d_model,), dtype, -bound2, bound2)
    return w1, b1, w2, b2


if __name__ == "__main__":
    key = jax.random.PRNGKey(0)
    k_x, k_p = jax.random.split(key)

    batch, seq, d_model, dff = 2, 8, 32, 64
    x = jax.random.normal(k_x, (batch, seq, d_model), dtype=jnp.float32)
    w1, b1, w2, b2 = init_ffn_params(k_p, d_model, dff)

    out = jax.block_until_ready(ffn_forward(x, w1, b1, w2, b2))

    # Pure-JAX reference with the same semantics as the PyTorch module.
    ref = jnp.maximum(x @ w1 + b1, 0.0) @ w2 + b2
    assert out.shape == (batch, seq, d_model)
    assert jnp.allclose(out, ref, atol=1e-5, rtol=1e-5)

    print("KERNEL_OK")
</pallas_src>

<mosaic_0001>
module attributes {stable_mosaic.version = 11 : i64} {
  func.func @ffn_kernel_fused(%arg0: i32, %arg1: i32, %arg2: memref<8x128xf32, #tpu.memory_space<vmem>>, %arg3: memref<128x128xf32, #tpu.memory_space<vmem>>, %arg4: memref<1x128xf32, #tpu.memory_space<vmem>>, %arg5: memref<128x128xf32, #tpu.memory_space<vmem>>, %arg6: memref<1x128xf32, #tpu.memory_space<vmem>>, %arg7: memref<8x128xf32, #tpu.memory_space<vmem>>) attributes {dimension_semantics = [#tpu.dimension_semantics<parallel>, #tpu.dimension_semantics<arbitrary>], iteration_bounds = array<i64: 2, 1>, scalar_prefetch = 0 : i64, scratch_operands = 0 : i64, tpu.core_type = #tpu.core_type<tc>, window_params = [{transform_indices = @transform_0, window_bounds = array<i64: 8, 128>}, {transform_indices = @transform_1, window_bounds = array<i64: 128, 128>}, {transform_indices = @transform_2, window_bounds = array<i64: 1, 128>}, {transform_indices = @transform_3, window_bounds = array<i64: 128, 128>}, {pipeline_mode = #tpu.pipeline_mode<synchronous>, transform_indices = @transform_4, window_bounds = array<i64: 1, 128>}, {transform_indices = @transform_5, window_bounds = array<i64: 8, 128>}]} {
    %c0 = arith.constant 0 : index
    %c0_0 = arith.constant 0 : index
    %0 = vector.load %arg2[%c0, %c0_0] : memref<8x128xf32, #tpu.memory_space<vmem>>, vector<8x128xf32>
    %c0_1 = arith.constant 0 : index
    %c0_2 = arith.constant 0 : index
    %1 = vector.load %arg3[%c0_1, %c0_2] : memref<128x128xf32, #tpu.memory_space<vmem>>, vector<128x128xf32>
    %cst = arith.constant dense<0.000000e+00> : vector<8x128xf32>
    %2 = tpu.matmul %0, %1, %cst {dimension_numbers = #tpu.dot_dimension_numbers<[1], [0], [0], [1], [0, 0, 1, 1], [], []>} : vector<8x128xf32>, vector<128x128xf32>, vector<8x128xf32> -> vector<8x128xf32>
    %c0_3 = arith.constant 0 : index
    %c0_4 = arith.constant 0 : index
    %3 = vector.load %arg4[%c0_3, %c0_4] : memref<1x128xf32, #tpu.memory_space<vmem>>, vector<1x128xf32>
    %4 = vector.broadcast %3 : vector<1x128xf32> to vector<8x128xf32>
    %5 = arith.addf %2, %4 : vector<8x128xf32>
    %cst_5 = arith.constant 0.000000e+00 : f32
    %6 = vector.broadcast %cst_5 : f32 to vector<8x128xf32>
    %7 = arith.maximumf %5, %6 : vector<8x128xf32>
    %c0_6 = arith.constant 0 : index
    %c0_7 = arith.constant 0 : index
    %8 = vector.load %arg5[%c0_6, %c0_7] : memref<128x128xf32, #tpu.memory_space<vmem>>, vector<128x128xf32>
    %cst_8 = arith.constant dense<0.000000e+00> : vector<8x128xf32>
    %9 = tpu.matmul %7, %8, %cst_8 {dimension_numbers = #tpu.dot_dimension_numbers<[1], [0], [0], [1], [0, 0, 1, 1], [], []>} : vector<8x128xf32>, vector<128x128xf32>, vector<8x128xf32> -> vector<8x128xf32>
    %c0_9 = arith.constant 0 : index
    %c0_10 = arith.constant 0 : index
    %10 = vector.load %arg6[%c0_9, %c0_10] : memref<1x128xf32, #tpu.memory_space<vmem>>, vector<1x128xf32>
    %11 = vector.broadcast %10 : vector<1x128xf32> to vector<8x128xf32>
    %12 = arith.addf %9, %11 : vector<8x128xf32>
    %c0_11 = arith.constant 0 : index
    %c0_12 = arith.constant 0 : index
    %13 = vector.load %arg7[%c0_11, %c0_12] : memref<8x128xf32, #tpu.memory_space<vmem>>, vector<8x128xf32>
    tpu.vector_store %arg7[%c0_11, %c0_12], %12 {strides = array<i32>} : memref<8x128xf32, #tpu.memory_space<vmem>>, vector<8x128xf32>,
    return
  }
  func.func @transform_0(%arg0: i32, %arg1: i32) -> (i32, i32) {
    %c0_i32 = arith.constant 0 : i32
    %c0_i32_0 = arith.constant 0 : i32
    return %arg0, %c0_i32 : i32, i32
  }
  func.func @transform_1(%arg0: i32, %arg1: i32) -> (i32, i32) {
    %c0_i32 = arith.constant 0 : i32
    %c0_i32_0 = arith.constant 0 : i32
    return %c0_i32, %arg1 : i32, i32
  }
  func.func @transform_2(%arg0: i32, %arg1: i32) -> (i32, i32) {
    %c0_i32 = arith.constant 0 : i32
    %c0_i32_0 = arith.constant 0 : i32
    return %c0_i32, %arg1 : i32, i32
  }
  func.func @transform_3(%arg0: i32, %arg1: i32) -> (i32, i32) {
    %c0_i32 = arith.constant 0 : i32
    %c0_i32_0 = arith.constant 0 : i32
    return %arg1, %c0_i32 : i32, i32
  }
  func.func @transform_4(%arg0: i32, %arg1: i32) -> (i32, i32) {
    %c0_i32 = arith.constant 0 : i32
    %c0_i32_0 = arith.constant 0 : i32
    %c0_i32_1 = arith.constant 0 : i32
    return %c0_i32, %c0_i32_0 : i32, i32
  }
  func.func @transform_5(%arg0: i32, %arg1: i32) -> (i32, i32) {
    %c0_i32 = arith.constant 0 : i32
    %c0_i32_0 = arith.constant 0 : i32
    return %arg0, %c0_i32 : i32, i32
  }
}

</mosaic_0001>

<llo_original>
// kernel: tpu_custom_call.1
$region0: #{tpu_custom_call.1}
  #allocation0 [shape = 'u32[]', space=smem, size = 0x4, offset = 0x4, fixed_abs, tag = 'smem constant byte address 0x4 - core index']
  #allocation1 [shape = 'u32[144,128]{1,0:T(1,128)}', space=vmem, size = 0x12000, scoped, tag = 'internal scratch']
  %s0 = inlined_call_operand.hbm [shape: f32[16,128], index: 0, kind: input, shape index: {}]
  %s1 = inlined_call_operand.hbm [shape: f32[128,128], index: 1, kind: input, shape index: {}]
  %s2 = inlined_call_operand.vmem [shape: f32[1,128], index: 2, kind: input, shape index: {}]
  %s3 = inlined_call_operand.hbm [shape: f32[128,128], index: 3, kind: input, shape index: {}]
  %s4 = inlined_call_operand.vmem [shape: f32[1,128], index: 4, kind: input, shape index: {}]
  %s5 = inlined_call_operand.hbm [shape: f32[16,128], index: 5, kind: output, shape index: {}]
  %s6 = sld [smem:[#allocation0]]
  $region65: #{tpu_custom_call.1} parent=0
    _
  %s8 = ssub.s32 1, %s6
  %s9 = scalar_select 0, %s8, %s6
  $region1: #{tpu_custom_call.1} parent=0
    #allocation2 [shape = 'u8[8192]{0}', space=vmem, size = 0x2000, scoped, tag = 'input window, operand 0']
    #allocation3 [shape = 's32[2]{0}', space=sflag, size = 0x8, scoped, tag = 'scoped memory for tpu_custom_call.1']
    #allocation4 [shape = 's32[2]{0}', space=sflag, size = 0x8, scoped, tag = 'scoped memory for tpu_custom_call.1']
    #allocation5 [shape = 'u8[65536]{0}', space=vmem, size = 0x10000, scoped, tag = 'input window, operand 1, single buffered']
    #allocation6 [shape = 's32[1]{0}', space=sflag, size = 0x4, scoped, tag = 'scoped memory for tpu_custom_call.1']
    #allocation7 [shape = 'u8[65536]{0}', space=vmem, size = 0x10000, scoped, tag = 'input window, operand 3, single buffered']
    #allocation8 [shape = 'u8[8192]{0}', space=vmem, size = 0x2000, scoped, tag = 'output window, operand 0']
    %10 = vsyncpa [#allocation3], 0
    %s11 = scalar_lea.sflag [#allocation3], 1
    %12 = vsyncpa %s11, 0
    %13 = vsyncpa [#allocation6], 0
    %14 = vsyncpa [#allocation4], 0
    %s15 = scalar_lea.sflag [#allocation4], 1
    %16 = vsyncpa %s15, 0
    loop: start=0, step=1, limit=4
    $region2: #{tpu_custom_call.1} parent=1 // loop_pre_header
      _
    $region3: #{tpu_custom_call.1} parent=1 // loop_header
      %s18 = sphi 0, %s22
      %p19 = scmp.ge.s32.totalorder %s18, 4
      %s25 = sphi 0, %s37
      %s26 = sphi 0, %s33
      %s27 = sphi 0, %s25
      %s28 = sphi 0, %s26
      %s29 = sphi 0, %s27
      %s30 = sphi 0, %s28
      %s40 = sphi 0, %s42
      %s43 = sphi 0, %s40
      %s44 = sphi 0, %s43
      %s60 = sphi 0, %s44
      %s66 = sphi 0, %s68
      %s69 = sphi 0, %s66
      %s70 = sphi 0, %s69
      %s86 = sphi 0, %s70
      %s92 = sphi 0, %s94
      %s95 = sphi 0, %s92
      %s96 = sphi 0, %s95
      %s112 = sphi 0, %s96
      %s118 = sphi 0, %s120
      %s121 = sphi 0, %s118
      %s122 = sphi 0, %s121
      %s138 = sphi 0, %s122
      %s142 = sphi 0, %s142
      %s144 = sphi 0, %s142
      %s145 = sphi 0, %s144
      %s159 = sphi 0, %s145
      %s165 = sphi 0, %s167
      %s168 = sphi 0, %s165
      %s169 = sphi 0, %s168
      %s185 = sphi 0, %s169
    $region4: #{tpu_custom_call.1} parent=1 // loop_header_branch
      %21 = sbr.rel (%p19) target = $region8
    $region5: #{tpu_custom_call.1} parent=1 // loop_body
      %s23 = ssub.s32 %s18, 1
      %s24 = ssub.s32 %s18, 2
      %s31 = sadd.s32 1, %s26
      %p32 = scmp.ge.s32.totalorder %s31, 1
      %s33 = scalar_select %p32, 0, %s31
      %s34 = sadd.s32 1, %s25
      %s35 = scalar_select %p32, %s34, %s25
      %p36 = scmp.ge.s32.totalorder %s35, 2
      %s37 = scalar_select %p36, 0, %s35
      %s38 = ssub.s32 %s25, %s37
      %p39 = scmp.eq.s32.totalorder %s38, 0
      %s41 = sadd.s32 %s40, 1
      %s42 = scalar_select %p39, %s40, %s41
      %p45 = pneg %p39
      %p46 = scmp.eq.s32.totalorder %s18, 1
      %p47 = por %p45, %p46
      %p48 = scmp.ne.s32.totalorder %s40, %s43
      %p49 = scmp.eq.s32.totalorder %s18, 0
      %p50 = por %p48, %p49
      %p51 = scmp.ne.s32.totalorder %s40, %s43
      %p52 = scmp.eq.s32.totalorder %s23, 1
      %p53 = por %p51, %p52
      %p54 = scmp.ne.s32.totalorder %s43, %s44
      %p55 = scmp.eq.s32.totalorder %s23, 0
      %p56 = por %p54, %p55
      %p57 = scmp.ne.s32.totalorder %s43, %s44
      %p58 = scmp.eq.s32.totalorder %s24, 1
      %p59 = por %p57, %p58
      %p61 = scmp.ne.s32.totalorder %s44, %s60
      %p62 = scmp.eq.s32.totalorder %s24, 0
      %p63 = por %p61, %p62
      %s64 = ssub.s32 %s26, %s33
      %p65 = scmp.eq.s32.totalorder %s64, 0
      %s67 = sadd.s32 %s66, 1
      %s68 = scalar_select %p65, %s66, %s67
      %p71 = pneg %p65
      %p72 = scmp.eq.s32.totalorder %s18, 1
      %p73 = por %p71, %p72
      %p74 = scmp.ne.s32.totalorder %s66, %s69
      %p75 = scmp.eq.s32.totalorder %s18, 0
      %p76 = por %p74, %p75
      %p77 = scmp.ne.s32.totalorder %s66, %s69
      %p78 = scmp.eq.s32.totalorder %s23, 1
      %p79 = por %p77, %p78
      %p80 = scmp.ne.s32.totalorder %s69, %s70
      %p81 = scmp.eq.s32.totalorder %s23, 0
      %p82 = por %p80, %p81
      %p83 = scmp.ne.s32.totalorder %s69, %s70
      %p84 = scmp.eq.s32.totalorder %s24, 1
      %p85 = por %p83, %p84
      %p87 = scmp.ne.s32.totalorder %s70, %s86
      %p88 = scmp.eq.s32.totalorder %s24, 0
      %p89 = por %p87, %p88
      %s90 = ssub.s32 %s26, %s33
      %p91 = scmp.eq.s32.totalorder %s90, 0
      %s93 = sadd.s32 %s92, 1
      %s94 = scalar_select %p91, %s92, %s93
      %p97 = pneg %p91
      %p98 = scmp.eq.s32.totalorder %s18, 1
      %p99 = por %p97, %p98
      %p100 = scmp.ne.s32.totalorder %s92, %s95
      %p101 = scmp.eq.s32.totalorder %s18, 0
      %p102 = por %p100, %p101
      %p103 = scmp.ne.s32.totalorder %s92, %s95
      %p104 = scmp.eq.s32.totalorder %s23, 1
      %p105 = por %p103, %p104
      %p106 = scmp.ne.s32.totalorder %s95, %s96
      %p107 = scmp.eq.s32.totalorder %s23, 0
      %p108 = por %p106, %p107
      %p109 = scmp.ne.s32.totalorder %s95, %s96
      %p110 = scmp.eq.s32.totalorder %s24, 1
      %p111 = por %p109, %p110
      %p113 = scmp.ne.s32.totalorder %s96, %s112
      %p114 = scmp.eq.s32.totalorder %s24, 0
      %p115 = por %p113, %p114
      %s116 = ssub.s32 %s26, %s33
      %p117 = scmp.eq.s32.totalorder %s116, 0
      %s119 = sadd.s32 %s118, 1
      %s120 = scalar_select %p117, %s118, %s119
      %p123 = pneg %p117
      %p124 = scmp.eq.s32.totalorder %s18, 1
      %p125 = por %p123, %p124
      %p126 = scmp.ne.s32.totalorder %s118, %s121
      %p127 = scmp.eq.s32.totalorder %s18, 0
      %p128 = por %p126, %p127
      %p129 = scmp.ne.s32.totalorder %s118, %s121
      %p130 = scmp.eq.s32.totalorder %s23, 1
      %p131 = por %p129, %p130
      %p132 = scmp.ne.s32.totalorder %s121, %s122
      %p133 = scmp.eq.s32.totalorder %s23, 0
      %p134 = por %p132, %p133
      %p135 = scmp.ne.s32.totalorder %s121, %s122
      %p136 = scmp.eq.s32.totalorder %s24, 1
      %p137 = por %p135, %p136
      %p139 = scmp.ne.s32.totalorder %s122, %s138
      %p140 = scmp.eq.s32.totalorder %s24, 0
      %p141 = por %p139, %p140
      %s143 = sadd.s32 %s142, 1
      %p146 = scmp.eq.s32.totalorder %s18, 1
      %p147 = scmp.ne.s32.totalorder %s142, %s144
      %p148 = scmp.eq.s32.totalorder %s18, 0
      %p149 = por %p147, %p148
      %p150 = scmp.ne.s32.totalorder %s142, %s144
      %p151 = scmp.eq.s32.totalorder %s23, 1
      %p152 = por %p150, %p151
      %p153 = scmp.ne.s32.totalorder %s144, %s145
      %p154 = scmp.eq.s32.totalorder %s23, 0
      %p155 = por %p153, %p154
      %p156 = scmp.ne.s32.totalorder %s144, %s145
      %p157 = scmp.eq.s32.totalorder %s24, 1
      %p158 = por %p156, %p157
      %p160 = scmp.ne.s32.totalorder %s145, %s159
      %p161 = scmp.eq.s32.totalorder %s24, 0
      %p162 = por %p160, %p161
      %s163 = ssub.s32 %s25, %s37
      %p164 = scmp.eq.s32.totalorder %s163, 0
      %s166 = sadd.s32 %s165, 1
      %s167 = scalar_select %p164, %s165, %s166
      %p170 = pneg %p164
      %p171 = scmp.eq.s32.totalorder %s18, 1
      %p172 = por %p170, %p171
      %p173 = scmp.ne.s32.totalorder %s165, %s168
      %p174 = scmp.eq.s32.totalorder %s18, 0
      %p175 = por %p173, %p174
      %p176 = scmp.ne.s32.totalorder %s165, %s168
      %p177 = scmp.eq.s32.totalorder %s23, 1
      %p178 = por %p176, %p177
      %p179 = scmp.ne.s32.totalorder %s168, %s169
      %p180 = scmp.eq.s32.totalorder %s23, 0
      %p181 = por %p179, %p180
      %p182 = scmp.ne.s32.totalorder %s168, %s169
      %p183 = scmp.eq.s32.totalorder %s24, 1
      %p184 = por %p182, %p183
      %p186 = scmp.ne.s32.totalorder %s169, %s185
      %p187 = scmp.eq.s32.totalorder %s24, 0
      %p188 = por %p186, %p187
      %p189 = scmp.le.s32.totalorder 1, %s18
      %p190 = scmp.lt.s32.totalorder %s18, 3
      %p191 = pnand %p189, %p190
      %p192 = pneg %p191
      // Predicated region
      $region9: #{tpu_custom_call.1} parent=5 // pred_check
        _
      $region10: #{tpu_custom_call.1} parent=5 // pred_check_branch
        %194 = sbr.rel (%p191) target = $region12
      $region11: #{tpu_custom_call.1} parent=5 // pred_region
        %s195 = ssub.s32 %s18, 1
        // Predicated region
        $region13: #{tpu_custom_call.1} parent=11 // pred_check
          %p196 = pneg %p82
        $region14: #{tpu_custom_call.1} parent=11 // pred_check_branch
          %198 = sbr.rel (%p196) target = $region16
        $region15: #{tpu_custom_call.1} parent=11 // pred_region
          %s200 = ssub.s32 2048, 2048
          %201 = vsyncadd [#allocation6], %s200
          %s202 = smul.addr %s28, 128
          %s203 = scalar_lea.hbm %s1, %s202
          %s204 = sshll.u32 [#allocation5], 4
          %s205 = int_to_ptr.vmem [resolvable:$true] %s204
          %210 = dma.hbm_to_vmem [thread:$0]  %s203, 2048, %s205, [#allocation6], 128, 128, 8
        $region16: #{tpu_custom_call.1} parent=11 // pred_fallthru
          _
        // Predicated region
        $region17: #{tpu_custom_call.1} parent=11 // pred_check
          %p211 = pneg %p108
        $region18: #{tpu_custom_call.1} parent=11 // pred_check_branch
          %213 = sbr.rel (%p211) target = $region20
        $region19: #{tpu_custom_call.1} parent=11 // pred_region
          %p214 = scmp.lt.s32.totalorder %s28, 0
          %s215 = scalar_select %p214, %s28, 0
          %s216 = scalar_lea.vmem %s2, %s215
        $region20: #{tpu_custom_call.1} parent=11 // pred_fallthru
          _
        // Predicated region
        $region21: #{tpu_custom_call.1} parent=11 // pred_check
          %p217 = pneg %p134
        $region22: #{tpu_custom_call.1} parent=11 // pred_check_branch
          %219 = sbr.rel (%p217) target = $region24
        $region23: #{tpu_custom_call.1} parent=11 // pred_region
          %s220 = smul.u32 16, %s28
          %s222 = ssub.s32 2048, 2048
          %223 = vsyncadd [#allocation6], %s222
          %s224 = smul.addr %s220, 128
          %s225 = scalar_lea.hbm %s3, %s224
          %s226 = sshll.u32 [#allocation7], 4
          %s227 = int_to_ptr.vmem [resolvable:$true] %s226
          %232 = dma.hbm_to_vmem [thread:$0]  %s225, 2048, %s227, [#allocation6], 128, 128, 8
        $region24: #{tpu_custom_call.1} parent=11 // pred_fallthru
          _
        // Predicated region
        $region25: #{tpu_custom_call.1} parent=11 // pred_check
          %p233 = pneg %p155
        $region26: #{tpu_custom_call.1} parent=11 // pred_check_branch
          %235 = sbr.rel (%p233) target = $region28
        $region27: #{tpu_custom_call.1} parent=11 // pred_region
          _
        $region28: #{tpu_custom_call.1} parent=11 // pred_fallthru
          _
      $region12: #{tpu_custom_call.1} parent=5 // pred_fallthru
        _
      %p236 = scmp.lt.s32.totalorder %s18, 2
      // Predicated region
      $region29: #{tpu_custom_call.1} parent=5 // pred_check
        %p237 = pneg %p236
      $region30: #{tpu_custom_call.1} parent=5 // pred_check_branch
        %239 = sbr.rel (%p237) target = $region32
      $region31: #{tpu_custom_call.1} parent=5 // pred_region
        // Predicated region
        $region33: #{tpu_custom_call.1} parent=31 // pred_check
          %p240 = pneg %p50
        $region34: #{tpu_custom_call.1} parent=31 // pred_check_branch
          %242 = sbr.rel (%p240) target = $region36
        $region35: #{tpu_custom_call.1} parent=31 // pred_region
          %s243 = sand.u32 %s40, 1
          %s244 = scalar_lea.sflag [#allocation3], %s243
          %s245 = sand.u32 %s40, 1
          %s246 = smul.addr %s245, 8
          %s247 = scalar_lea.vmem [#allocation2], %s246
          %s249 = ssub.s32 128, 128
          %250 = vsyncadd %s244, %s249
          %s251 = smul.addr %s25, 128
          %s252 = scalar_lea.hbm %s0, %s251
          %s254 = sshll.u32 %s247, 4
          %s255 = int_to_ptr.vmem [resolvable:$true] %s254
          %257 = dma.hbm_to_vmem [thread:$0]  %s252, 128, %s255, %s244
        $region36: #{tpu_custom_call.1} parent=31 // pred_fallthru
          _
      $region32: #{tpu_custom_call.1} parent=5 // pred_fallthru
        _
      %p258 = scmp.le.s32.totalorder 1, %s18
      %p259 = scmp.lt.s32.totalorder %s18, 3
      %p260 = pnand %p258, %p259
      %p261 = pneg %p260
      // Predicated region
      $region37: #{tpu_custom_call.1} parent=5 // pred_check
        _
      $region38: #{tpu_custom_call.1} parent=5 // pred_check_branch
        %263 = sbr.rel (%p260) target = $region40
      $region39: #{tpu_custom_call.1} parent=5 // pred_region
        %s264 = ssub.s32 %s18, 1
        %s265 = sand.u32 %s43, 1
        %s266 = scalar_lea.sflag [#allocation3], %s265
        %s267 = sand.u32 %s43, 1
        %s268 = smul.addr %s267, 8
        %s269 = scalar_lea.vmem [#allocation2], %s268
        // Predicated region
        $region41: #{tpu_custom_call.1} parent=39 // pred_check
          %p270 = pneg %p56
        $region42: #{tpu_custom_call.1} parent=39 // pred_check_branch
          %272 = sbr.rel (%p270) target = $region44
        $region43: #{tpu_custom_call.1} parent=39 // pred_region
          %273 = dma.done %s266, 128
        $region44: #{tpu_custom_call.1} parent=39 // pred_fallthru
          _
        // Predicated region
        $region45: #{tpu_custom_call.1} parent=39 // pred_check
          %p274 = pneg %p82
        $region46: #{tpu_custom_call.1} parent=39 // pred_check_branch
          %276 = sbr.rel (%p274) target = $region48
        $region47: #{tpu_custom_call.1} parent=39 // pred_region
          %277 = dma.done [#allocation6], 2048
        $region48: #{tpu_custom_call.1} parent=39 // pred_fallthru
          _
        // Predicated region
        $region49: #{tpu_custom_call.1} parent=39 // pred_check
          %p278 = pneg %p134
        $region50: #{tpu_custom_call.1} parent=39 // pred_check_branch
          %280 = sbr.rel (%p278) target = $region52
        $region51: #{tpu_custom_call.1} parent=39 // pred_region
          %281 = dma.done [#allocation6], 2048
        $region52: #{tpu_custom_call.1} parent=39 // pred_fallthru
          _
        %s282 = sand.u32 %s43, 1
        %s283 = scalar_lea.sflag [#allocation3], %s282
        %s284 = sand.u32 %s43, 1
        %s285 = smul.addr %s284, 8
        %s286 = scalar_lea.vmem [#allocation2], %s285
        %p287 = pneg %p56
        %p288 = pneg %p53
        %p289 = pneg %p82
        %p290 = pneg %p79
        %p291 = scmp.lt.s32.totalorder %s28, 0
        %s292 = scalar_select %p291, %s28, 0
        %s293 = scalar_lea.vmem %s2, %s292
        %p294 = pneg %p108
        %p295 = pneg %p105
        %p296 = pneg %p134
        %p297 = pneg %p131
        %p298 = pneg %p155
        %p299 = pneg %p152
        %p300 = pneg %p181
        %p301 = pneg %p178
        %s302 = sand.u32 %s168, 1
        %s303 = scalar_lea.sflag [#allocation4], %s302
        %s304 = sand.u32 %s168, 1
        %s305 = smul.addr %s304, 8
        %s306 = scalar_lea.vmem [#allocation8], %s305
        %p307 = scmp.lt.s32.totalorder %s28, 0
        %s308 = scalar_select %p307, %s28, 0
        %s309 = scalar_lea.vmem %s2, %s308
        %s310 = smul.u32 16, %s28
        %v311 = vld [vmem:[%s269] sm:$0xff]
        %v312 = vld [vmem:[#allocation5] sm:$0xff]
        %v313 = vld [vmem:[#allocation5 + $0x8] sm:$0xff]
        %v314 = vld [vmem:[#allocation5 + $0x10] sm:$0xff]
        %v315 = vld [vmem:[#allocation5 + $0x18] sm:$0xff]
        %v316 = vld [vmem:[#allocation5 + $0x20] sm:$0xff]
        %v317 = vld [vmem:[#allocation5 + $0x28] sm:$0xff]
        %v318 = vld [vmem:[#allocation5 + $0x30] sm:$0xff]
        %v319 = vld [vmem:[#allocation5 + $0x38] sm:$0xff]
        %v320 = vld [vmem:[#allocation5 + $0x40] sm:$0xff]
        %v321 = vld [vmem:[#allocation5 + $0x48] sm:$0xff]
        %v322 = vld [vmem:[#allocation5 + $0x50] sm:$0xff]
        %v323 = vld [vmem:[#allocation5 + $0x58] sm:$0xff]
        %v324 = vld [vmem:[#allocation5 + $0x60] sm:$0xff]
        %v325 = vld [vmem:[#allocation5 + $0x68] sm:$0xff]
        %v326 = vld [vmem:[#allocation5 + $0x70] sm:$0xff]
        %v327 = vld [vmem:[#allocation5 + $0x78] sm:$0xff]
        %v328 = vld [vmem:[%s309] sm:$0x1]
        %v330 = vlaneseq
        %v331 = vshrl.u32 %v330, 7
        %v332 = vsub.s32 0, %v331
        %v333 = vrot.slane %v328, %v332
        %335 = vmatprep.subr.mxu0 0.0
        %336 = vmatpush1.msra.mxu0 %v312
        %337 = vmatprep.subr.mxu0 0.0
        %338 = vmatpush1.msra.mxu0 %v313
        %339 = vmatprep.subr.mxu0 0.0
        %340 = vmatpush1.msra.mxu0 %v314
        %341 = vmatprep.subr.mxu0 0.0
        %342 = vmatpush1.msra.mxu0 %v315
        %343 = vmatprep.subr.mxu0 0.0
        %344 = vmatpush1.msra.mxu0 %v316
        %345 = vmatprep.subr.mxu0 0.0
        %346 = vmatpush1.msra.mxu0 %v317
        %347 = vmatprep.subr.mxu0 0.0
        %348 = vmatpush1.msra.mxu0 %v318
        %349 = vmatprep.subr.mxu0 0.0
        %350 = vmatpush1.msra.mxu0 %v319
        %351 = vmatprep.subr.mxu0 0.0
        %352 = vmatpush1.msra.mxu0 %v320
        %353 = vmatprep.subr.mxu0 0.0
        %354 = vmatpush1.msra.mxu0 %v321
        %355 = vmatprep.subr.mxu0 0.0
        %356 = vmatpush1.msra.mxu0 %v322
        %357 = vmatprep.subr.mxu0 0.0
        %358 = vmatpush1.msra.mxu0 %v323
        %359 = vmatprep.subr.mxu0 0.0
        %360 = vmatpush1.msra.mxu0 %v324
        %361 = vmatprep.subr.mxu0 0.0
        %362 = vmatpush1.msra.mxu0 %v325
        %363 = vmatprep.subr.mxu0 0.0
        %364 = vmatpush1.msra.mxu0 %v326
        %365 = vmatprep.subr.mxu0 0.0
        %366 = vmatpush1.msra.mxu0 %v327
        %367 = vmatprep.subr.mxu0 0.0
        %368 = vmatpush1.msra.mxu0 0.0
        %369 = vmatprep.subr.mxu0 0.0
        %370 = vmatpush1.msra.mxu0 0.0
        %371 = vmatprep.subr.mxu0 0.0
        %372 = vmatpush1.msra.mxu0 0.0
        %373 = vmatprep.subr.mxu0 0.0
        %374 = vmatpush1.msra.mxu0 0.0
        %375 = vmatprep.subr.mxu0 0.0
        %376 = vmatpush1.msra.mxu0 0.0
        %377 = vmatprep.subr.mxu0 0.0
        %378 = vmatpush1.msra.mxu0 0.0
        %379 = vmatprep.subr.mxu0 0.0
        %380 = vmatpush1.msra.mxu0 0.0
        %381 = vmatprep.subr.mxu0 0.0
        %382 = vmatpush1.msra.mxu0 0.0
        %383 = vmatprep.subr.mxu0 0.0
        %384 = vmatpush1.msra.mxu0 0.0
        %385 = vmatprep.subr.mxu0 0.0
        %386 = vmatpush1.msra.mxu0 0.0
        %387 = vmatprep.subr.mxu0 0.0
        %388 = vmatpush1.msra.mxu0 0.0
        %389 = vmatprep.subr.mxu0 0.0
        %390 = vmatpush1.msra.mxu0 0.0
        %391 = vmatprep.subr.mxu0 0.0
        %392 = vmatpush1.msra.mxu0 0.0
        %393 = vmatprep.subr.mxu0 0.0
        %394 = vmatpush1.msra.mxu0 0.0
        %395 = vmatprep.subr.mxu0 0.0
        %396 = vmatpush1.msra.mxu0 0.0
        %397 = vmatprep.subr.mxu0 0.0
        %398 = vmatpush1.msra.mxu0 0.0
        %399 = vmatprep.mubr.f32.mxu0 0.0
        %400 = vmatmul.mubr.f32.gmra.mrb[0].mxu0 %v311
        %v401 = vpop.f32.mrb[0].mxu0
        %v402 = vadd.f32 %v333, %v401
        %v403 = vpop.f32.mrb[0].mxu0
        %404 = vdwg.mxu0
        %v405 = vmax.f32 %v402, 0.0
        %v406 = vld [vmem:[#allocation7] sm:$0xff]
        %v407 = vld [vmem:[#allocation7 + $0x8] sm:$0xff]
        %v408 = vld [vmem:[#allocation7 + $0x10] sm:$0xff]
        %v409 = vld [vmem:[#allocation7 + $0x18] sm:$0xff]
        %v410 = vld [vmem:[#allocation7 + $0x20] sm:$0xff]
        %v411 = vld [vmem:[#allocation7 + $0x28] sm:$0xff]
        %v412 = vld [vmem:[#allocation7 + $0x30] sm:$0xff]
        %v413 = vld [vmem:[#allocation7 + $0x38] sm:$0xff]
        %v414 = vld [vmem:[#allocation7 + $0x40] sm:$0xff]
        %v415 = vld [vmem:[#allocation7 + $0x48] sm:$0xff]
        %v416 = vld [vmem:[#allocation7 + $0x50] sm:$0xff]
        %v417 = vld [vmem:[#allocation7 + $0x58] sm:$0xff]
        %v418 = vld [vmem:[#allocation7 + $0x60] sm:$0xff]
        %v419 = vld [vmem:[#allocation7 + $0x68] sm:$0xff]
        %v420 = vld [vmem:[#allocation7 + $0x70] sm:$0xff]
        %v421 = vld [vmem:[#allocation7 + $0x78] sm:$0xff]
        %v422 = vld [vmem:[%s4] sm:$0x1]
        %v424 = vlaneseq
        %v425 = vshrl.u32 %v424, 7
        %v426 = vsub.s32 0, %v425
        %v427 = vrot.slane %v422, %v426
        %429 = vmatprep.subr.mxu0 0.0
        %430 = vmatpush1.msra.mxu0 %v406
        %431 = vmatprep.subr.mxu0 0.0
        %432 = vmatpush1.msra.mxu0 %v407
        %433 = vmatprep.subr.mxu0 0.0
        %434 = vmatpush1.msra.mxu0 %v408
        %435 = vmatprep.subr.mxu0 0.0
        %436 = vmatpush1.msra.mxu0 %v409
        %437 = vmatprep.subr.mxu0 0.0
        %438 = vmatpush1.msra.mxu0 %v410
        %439 = vmatprep.subr.mxu0 0.0
        %440 = vmatpush1.msra.mxu0 %v411
        %441 = vmatprep.subr.mxu0 0.0
        %442 = vmatpush1.msra.mxu0 %v412
        %443 = vmatprep.subr.mxu0 0.0
        %444 = vmatpush1.msra.mxu0 %v413
        %445 = vmatprep.subr.mxu0 0.0
        %446 = vmatpush1.msra.mxu0 %v414
        %447 = vmatprep.subr.mxu0 0.0
        %448 = vmatpush1.msra.mxu0 %v415
        %449 = vmatprep.subr.mxu0 0.0
        %450 = vmatpush1.msra.mxu0 %v416
        %451 = vmatprep.subr.mxu0 0.0
        %452 = vmatpush1.msra.mxu0 %v417
        %453 = vmatprep.subr.mxu0 0.0
        %454 = vmatpush1.msra.mxu0 %v418
        %455 = vmatprep.subr.mxu0 0.0
        %456 = vmatpush1.msra.mxu0 %v419
        %457 = vmatprep.subr.mxu0 0.0
        %458 = vmatpush1.msra.mxu0 %v420
        %459 = vmatprep.subr.mxu0 0.0
        %460 = vmatpush1.msra.mxu0 %v421
        %461 = vmatprep.subr.mxu0 0.0
        %462 = vmatpush1.msra.mxu0 0.0
        %463 = vmatprep.subr.mxu0 0.0
        %464 = vmatpush1.msra.mxu0 0.0
        %465 = vmatprep.subr.mxu0 0.0
        %466 = vmatpush1.msra.mxu0 0.0
        %467 = vmatprep.subr.mxu0 0.0
        %468 = vmatpush1.msra.mxu0 0.0
        %469 = vmatprep.subr.mxu0 0.0
        %470 = vmatpush1.msra.mxu0 0.0
        %471 = vmatprep.subr.mxu0 0.0
        %472 = vmatpush1.msra.mxu0 0.0
        %473 = vmatprep.subr.mxu0 0.0
        %474 = vmatpush1.msra.mxu0 0.0
        %475 = vmatprep.subr.mxu0 0.0
        %476 = vmatpush1.msra.mxu0 0.0
        %477 = vmatprep.subr.mxu0 0.0
        %478 = vmatpush1.msra.mxu0 0.0
        %479 = vmatprep.subr.mxu0 0.0
        %480 = vmatpush1.msra.mxu0 0.0
        %481 = vmatprep.subr.mxu0 0.0
        %482 = vmatpush1.msra.mxu0 0.0
        %483 = vmatprep.subr.mxu0 0.0
        %484 = vmatpush1.msra.mxu0 0.0
        %485 = vmatprep.subr.mxu0 0.0
        %486 = vmatpush1.msra.mxu0 0.0
        %487 = vmatprep.subr.mxu0 0.0
        %488 = vmatpush1.msra.mxu0 0.0
        %489 = vmatprep.subr.mxu0 0.0
        %490 = vmatpush1.msra.mxu0 0.0
        %491 = vmatprep.subr.mxu0 0.0
        %492 = vmatpush1.msra.mxu0 0.0
        %493 = vmatprep.mubr.f32.mxu0 0.0
        %494 = vmatmul.mubr.f32.gmra.mrb[0].mxu0 %v405
        %v495 = vpop.f32.mrb[0].mxu0
        %v496 = vadd.f32 %v427, %v495
        %v497 = vpop.f32.mrb[0].mxu0
        %498 = vdwg.mxu0
        %499 = vst [vmem:[%s306] sm:$0xff] %v496
        %s500 = sand.u32 %s168, 1
        %s501 = scalar_lea.sflag [#allocation4], %s500
        %s502 = sand.u32 %s168, 1
        %s503 = smul.addr %s502, 8
        %s504 = scalar_lea.vmem [#allocation8], %s503
        // Predicated region
        $region53: #{tpu_custom_call.1} parent=39 // pred_check
          %p505 = pneg %p178
        $region54: #{tpu_custom_call.1} parent=39 // pred_check_branch
          %507 = sbr.rel (%p505) target = $region56
        $region55: #{tpu_custom_call.1} parent=39 // pred_region
          %s509 = ssub.s32 128, 128
          %510 = vsyncadd %s501, %s509
          %s511 = smul.addr %s27, 128
          %s512 = scalar_lea.hbm %s5, %s511
          %s514 = sshll.u32 %s504, 4
          %s515 = int_to_ptr.vmem [resolvable:$true] %s514
          %517 = dma.vmem_to_hbm [thread:$0]  %s515, 128, %s512, %s501
        $region56: #{tpu_custom_call.1} parent=39 // pred_fallthru
          _
      $region40: #{tpu_custom_call.1} parent=5 // pred_fallthru
        _
      %p518 = scmp.le.s32.totalorder 2, %s18
      // Predicated region
      $region57: #{tpu_custom_call.1} parent=5 // pred_check
        %p519 = pneg %p518
      $region58: #{tpu_custom_call.1} parent=5 // pred_check_branch
        %521 = sbr.rel (%p519) target = $region60
      $region59: #{tpu_custom_call.1} parent=5 // pred_region
        %s522 = ssub.s32 %s18, 2
        // Predicated region
        $region61: #{tpu_custom_call.1} parent=59 // pred_check
          %p523 = pneg %p184
        $region62: #{tpu_custom_call.1} parent=59 // pred_check_branch
          %525 = sbr.rel (%p523) target = $region64
        $region63: #{tpu_custom_call.1} parent=59 // pred_region
          %s526 = sand.u32 %s169, 1
          %s527 = scalar_lea.sflag [#allocation4], %s526
          %s528 = sand.u32 %s169, 1
          %s529 = smul.addr %s528, 8
          %s530 = scalar_lea.vmem [#allocation8], %s529
          %531 = dma.done %s527, 128
        $region64: #{tpu_custom_call.1} parent=59 // pred_fallthru
          _
      $region60: #{tpu_custom_call.1} parent=5 // pred_fallthru
        _
    $region6: #{tpu_custom_call.1} parent=1 // loop_footer
      %s22 = sadd.s32 1, %s18
    $region7: #{tpu_custom_call.1} parent=1 // loop_footer_branch
      %17 = sbr.rel target = $region3
    $region8: #{tpu_custom_call.1} parent=1 // loop_exit
      _
    %532 = vsyncpa [#allocation3], 1
    %s533 = scalar_lea.sflag [#allocation3], 1
    %534 = vsyncpa %s533, 1
    %535 = vsyncpa [#allocation6], 1
    %536 = vsyncpa [#allocation4], 1
    %s537 = scalar_lea.sflag [#allocation4], 1
    %538 = vsyncpa %s537, 1

</llo_original>
